<compile_context>
chip_gen: v6e
topology: v6e:2x2x1
jax: 0.10.0
libtpu: 0.0.40
codegen_flags: <defaults>
</compile_context>

<pallas_src>
import functools

import jax
import jax.numpy as jnp
from jax.experimental import pallas as pl
from jax.experimental.pallas import tpu as pltpu


def _cdiv(a, b):
    return -(-a // b)


def _round_up(a, b):
    return _cdiv(a, b) * b


def _default_num_parallel():
    """2 parallel grid slices on v7x (2 TensorCores), 1 elsewhere."""
    try:
        kind = jax.devices()[0].device_kind.lower()
    except Exception:
        return 1
    return 2 if "v7" in kind else 1


def _pu_partials_kernel(inp_ref, tgt_ref, out_ref, *, rows, tm, inner):
    """Accumulate 4 partial sums into the resident (1, 4, 8, 128) output block.

    With the signed-mask identity (targets in {+1, -1, 0}):
      out[0, 0] : sum(t)              = n_pos - n_unl
      out[0, 1] : sum(|t|)            = n_pos + n_unl
      out[0, 2] : sum(sigmoid(-x)*t)  = s_pos - s_unl   (s_* = masked sigmoid sums)
      out[0, 3] : sum(sigmoid(-x)*|t|)= s_pos + s_unl
    """
    p = pl.program_id(0)
    i = pl.program_id(1)

    @pl.when(i == 0)
    def _():
        out_ref[...] = jnp.zeros_like(out_ref)

    # Linear (unclamped) block id.  The index_map clamps the DMA to the last
    # in-bounds block; the mask below zeroes any rows past the real extent
    # (ragged last tile and duplicated overshoot tiles).
    start = (p * inner + i) * tm
    valid_rows = rows - start          # may be <= 0 (duplicate) or < tm (ragged)

    def accumulate(x, t):
        t_abs = jnp.abs(t)
        # sigmoid(-x) = 0.5 - 0.5*tanh(x/2): single EUP transcendental / element.
        s = 0.5 - 0.5 * jnp.tanh(0.5 * x)

        def fold(v):
            # (tm, 128) -> (8, 128): pure vreg-wise VPU adds, no XLU reductions.
            return v.reshape(tm // 8, 8, 128).sum(axis=0)

        out_ref[0, 0] += fold(t)
        out_ref[0, 1] += fold(t_abs)
        out_ref[0, 2] += fold(s * t)
        out_ref[0, 3] += fold(s * t_abs)

    @pl.when(valid_rows >= tm)          # full tile: no masking overhead
    def _():
        accumulate(inp_ref[...].astype(jnp.float32),
                   tgt_ref[...].astype(jnp.float32))

    @pl.when(valid_rows < tm)           # ragged / duplicated tile: mask rows
    def _():
        row = jax.lax.broadcasted_iota(jnp.int32, (tm, 128), 0)
        keep = row < valid_rows
        # Mask both x and t: OOB DMA contents are unspecified (could be NaN).
        x = jnp.where(keep, inp_ref[...].astype(jnp.float32), 0.0)
        t = jnp.where(keep, tgt_ref[...].astype(jnp.float32), 0.0)
        accumulate(x, t)


def pu_loss(inp, target, *, prior, gamma=1.0, beta=0.0, nnPU=False,
            tm_max=8192, n_parallel=None):
    """PU risk matching the PyTorch PULoss.forward.  Targets must be +1 / -1
    (any zero-padding added here contributes nothing to either class)."""
    assert inp.shape == target.shape, (
        f"prediction shape {inp.shape} must be equal target shape {target.shape}")
    if not 0.0 < prior < 1.0:
        raise NotImplementedError("The class prior should be in (0, 1)")

    flat_i = inp.reshape(-1)
    flat_t = target.reshape(-1)
    n = flat_i.shape[0]

    P = _default_num_parallel() if n_parallel is None else int(n_parallel)
    P = max(1, P)

    itemsize_i = inp.dtype.itemsize
    itemsize_t = target.dtype.itemsize
    # Row alignment so that (tm, 128) blocks satisfy sublane tiling for the
    # narrowest streamed dtype (f32/i32 -> 8, bf16 -> 16, int8 -> 32).
    r_align = max(8, 32 // max(1, min(itemsize_i, itemsize_t)))

    rows = _cdiv(max(n, 1), 128)
    rows_p = _round_up(rows, r_align)
    pad = rows_p * 128 - n
    if pad:
        # Zero padding is a numerical no-op (target == 0 -> no contribution).
        # Granularity is at most r_align*128 elements; inputs already aligned
        # to that take this branch never -> zero extra HBM traffic.
        flat_i = jnp.pad(flat_i, (0, pad))
        flat_t = jnp.pad(flat_t, (0, pad))

    x2 = flat_i.reshape(rows_p, 128)
    t2 = flat_t.reshape(rows_p, 128)

    # Row-tile sizing: as large as the double-buffered VMEM budget allows.
    vmem_budget = 24 * 1024 * 1024                       # input buffers budget
    bytes_per_row = 128 * (itemsize_i + itemsize_t) * 2  # x2 double buffering
    tm_budget = max(r_align, vmem_budget // bytes_per_row)
    tm = max(r_align, (min(tm_max, tm_budget) // 32) * 32)
    tm = min(tm, _round_up(_cdiv(rows_p, P), 32))        # per-core share
    tm = min(tm, rows_p)                                 # never exceed array

    num_blocks = _cdiv(rows_p, tm)
    P = min(P, num_blocks)
    inner = _cdiv(num_blocks, P)

    kernel = functools.partial(_pu_partials_kernel,
                               rows=rows_p, tm=tm, inner=inner)

    def in_map(p, i):
        # Clamp so no DMA ever targets a fully out-of-bounds block; the kernel
        # masks the duplicated tile to a zero contribution.
        return (jnp.minimum(p * inner + i, num_blocks - 1), 0)

    partials = pl.pallas_call(
        kernel,
        out_shape=jax.ShapeDtypeStruct((P, 4, 8, 128), jnp.float32),
        grid_spec=pltpu.PrefetchScalarGridSpec(
            num_scalar_prefetch=0,
            grid=(P, inner),
            in_specs=[
                pl.BlockSpec((tm, 128), in_map),
                pl.BlockSpec((tm, 128), in_map),
            ],
            out_specs=pl.BlockSpec((1, 4, 8, 128), lambda p, i: (p, 0, 0, 0)),
        ),
        compiler_params=pltpu.CompilerParams(
            dimension_semantics=("parallel", "arbitrary"),
            vmem_limit_bytes=32 * 1024 * 1024),
    )(x2, t2)

    # Tiny epilogue in plain JAX: reduce the (P, 4, 8, 128) partials and combine.
    sums = jnp.sum(partials, axis=(0, 2, 3))              # (4,)
    sum_t, sum_abs_t, sum_st, sum_s_abs_t = sums[0], sums[1], sums[2], sums[3]

    cnt_pos = 0.5 * (sum_abs_t + sum_t)
    cnt_unl = 0.5 * (sum_abs_t - sum_t)
    s_sp = 0.5 * (sum_s_abs_t + sum_st)   # sum(sigmoid(-x) * positive)
    s_su = 0.5 * (sum_s_abs_t - sum_st)   # sum(sigmoid(-x) * unlabeled)

    min_count = 1.0
    n_pos = jnp.maximum(cnt_pos, min_count)
    n_unl = jnp.maximum(cnt_unl, min_count)

    # sigmoid(x) = 1 - sigmoid(-x):
    #   sum(sigmoid(x)*pos) = cnt_pos - s_sp ; sum(sigmoid(x)*unl) = cnt_unl - s_su
    positive_risk = prior * s_sp / n_pos
    negative_risk = -prior * (cnt_pos - s_sp) / n_pos + (cnt_unl - s_su) / n_unl

    if nnPU:
        # Data-dependent branch from the PyTorch forward -> traceable select.
        return jnp.where(negative_risk < -beta,
                         -gamma * negative_risk,
                         positive_risk + negative_risk)
    return positive_risk + negative_risk


def pu_loss_ref(inp, target, *, prior, gamma=1.0, beta=0.0, nnPU=False):
    """Pure-JAX reference matching the PyTorch forward."""
    inp = inp.astype(jnp.float32)
    target = target.astype(jnp.float32)
    positive = (target == 1.0).astype(jnp.float32)
    unlabeled = (target == -1.0).astype(jnp.float32)
    n_positive = jnp.maximum(jnp.sum(positive), 1.0)
    n_unlabeled = jnp.maximum(jnp.sum(unlabeled), 1.0)
    loss = lambda x: jax.nn.sigmoid(-x)
    y_positive = loss(inp) * positive
    y_positive_inv = loss(-inp) * positive
    y_unlabeled = loss(-inp) * unlabeled
    positive_risk = prior * jnp.sum(y_positive) / n_positive
    negative_risk = (-prior * jnp.sum(y_positive_inv) / n_positive
                     + jnp.sum(y_unlabeled) / n_unlabeled)
    if nnPU:
        return jnp.where(negative_risk < -beta,
                         -gamma * negative_risk,
                         positive_risk + negative_risk)
    return positive_risk + negative_risk


if __name__ == "__main__":
    key = jax.random.PRNGKey(0)
    keys = jax.random.split(key, 6)
    prior = 0.3

    # 1) Small PU-learning batch of logits: (2, 4, 16, 16) = 2048 elements
    #    (multiple of 8*128 -> zero-copy path), jitted end-to-end.
    shape = (2, 4, 16, 16)
    inp = jax.random.normal(keys[0], shape, dtype=jnp.float32)
    target = jnp.where(jax.random.bernoulli(keys[1], 0.3, shape), 1.0, -1.0
                       ).astype(jnp.float32)

    loss_fn = jax.jit(functools.partial(pu_loss, prior=prior))
    out = jax.block_until_ready(loss_fn(inp, target))
    ref = pu_loss_ref(inp, target, prior=prior)
    assert jnp.allclose(out, ref, rtol=1e-4, atol=1e-5), (out, ref)

    # 2) Same data, nnPU=True branch.
    out_nn = jax.block_until_ready(
        pu_loss(inp, target, prior=prior, gamma=1.0, beta=0.0, nnPU=True))
    ref_nn = pu_loss_ref(inp, target, prior=prior, gamma=1.0, beta=0.0, nnPU=True)
    assert jnp.allclose(out_nn, ref_nn, rtol=1e-4, atol=1e-5), (out_nn, ref_nn)

    # 3) Ragged shape (105 elements) exercising the small zero-pad path.
    shape3 = (3, 5, 7)
    inp3 = jax.random.normal(keys[2], shape3, dtype=jnp.float32)
    target3 = jnp.where(jax.random.bernoulli(keys[3], 0.4, shape3), 1.0, -1.0
                        ).astype(jnp.float32)
    out3 = jax.block_until_ready(pu_loss(inp3, target3, prior=prior))
    ref3 = pu_loss_ref(inp3, target3, prior=prior)
    assert jnp.allclose(out3, ref3, rtol=1e-4, atol=1e-5), (out3, ref3)

    # 4) int8 targets (reduced HBM traffic path; 32-row alignment).
    out4 = jax.block_until_ready(
        pu_loss(inp, target.astype(jnp.int8), prior=prior))
    assert jnp.allclose(out4, ref, rtol=1e-4, atol=1e-5), (out4, ref)

    # 5) Partial last tile + 2-way parallel grid (masked path exercised).
    n5 = 40 * 128
    inp5 = jax.random.normal(keys[4], (n5,), dtype=jnp.float32)
    target5 = jnp.where(jax.random.bernoulli(keys[5], 0.5, (n5,)), 1.0, -1.0
                        ).astype(jnp.float32)
    out5 = jax.block_until_ready(
        pu_loss(inp5, target5, prior=prior, tm_max=32, n_parallel=2))
    ref5 = pu_loss_ref(inp5, target5, prior=prior)
    assert jnp.allclose(out5, ref5, rtol=1e-4, atol=1e-5), (out5, ref5)

    # 6) Multi-step accumulation along the reduction axis, nnPU branch.
    out6 = jax.block_until_ready(
        pu_loss(inp5, target5, prior=prior, nnPU=True, tm_max=8, n_parallel=1))
    ref6 = pu_loss_ref(inp5, target5, prior=prior, nnPU=True)
    assert jnp.allclose(out6, ref6, rtol=1e-4, atol=1e-5), (out6, ref6)

    print("KERNEL_OK")
</pallas_src>

<mosaic_0001>
module attributes {stable_mosaic.version = 11 : i64} {
  func.func @_pu_partials_kernel(%arg0: i32, %arg1: i32, %arg2: memref<16x128xf32, #tpu.memory_space<vmem>>, %arg3: memref<16x128xf32, #tpu.memory_space<vmem>>, %arg4: memref<1x4x8x128xf32, #tpu.memory_space<vmem>>) attributes {dimension_semantics = [#tpu.dimension_semantics<parallel>, #tpu.dimension_semantics<arbitrary>], iteration_bounds = array<i64: 1, 1>, scalar_prefetch = 0 : i64, scratch_operands = 0 : i64, tpu.core_type = #tpu.core_type<tc>, window_params = [{transform_indices = @transform_0, window_bounds = array<i64: 16, 128>}, {transform_indices = @transform_1, window_bounds = array<i64: 16, 128>}, {transform_indices = @transform_2, window_bounds = array<i64: 1, 4, 8, 128>}]} {
    %c0_i32 = arith.constant 0 : i32
    %0 = arith.cmpi eq, %arg1, %c0_i32 : i32
    %1 = arith.extui %0 : i1 to i32
    %c0_i32_0 = arith.constant 0 : i32
    %2 = arith.cmpi ne, %1, %c0_i32_0 : i32
    scf.if %2 {
      %cst = arith.constant 0.000000e+00 : f32
      %13 = vector.broadcast %cst : f32 to vector<1x4x8x128xf32>
      %c0 = arith.constant 0 : index
      %c0_6 = arith.constant 0 : index
      %c0_7 = arith.constant 0 : index
      %c0_8 = arith.constant 0 : index
      %14 = vector.load %arg4[%c0, %c0_6, %c0_7, %c0_8] : memref<1x4x8x128xf32, #tpu.memory_space<vmem>>, vector<1x4x8x128xf32>
      tpu.vector_store %arg4[%c0, %c0_6, %c0_7, %c0_8], %13 {strides = array<i32>} : memref<1x4x8x128xf32, #tpu.memory_space<vmem>>, vector<1x4x8x128xf32>,
    } else {
    }
    %c1_i32 = arith.constant 1 : i32
    %3 = arith.muli %arg0, %c1_i32 : i32
    %4 = arith.addi %3, %arg1 : i32
    %c16_i32 = arith.constant 16 : i32
    %5 = arith.muli %4, %c16_i32 : i32
    %c16_i32_1 = arith.constant 16 : i32
    %6 = arith.subi %c16_i32_1, %5 : i32
    %c16_i32_2 = arith.constant 16 : i32
    %7 = arith.cmpi sge, %6, %c16_i32_2 : i32
    %8 = arith.extui %7 : i1 to i32
    %c0_i32_3 = arith.constant 0 : i32
    %9 = arith.cmpi ne, %8, %c0_i32_3 : i32
    scf.if %9 {
      %c0 = arith.constant 0 : index
      %c0_6 = arith.constant 0 : index
      %13 = vector.load %arg2[%c0, %c0_6] : memref<16x128xf32, #tpu.memory_space<vmem>>, vector<16x128xf32>
      %c0_7 = arith.constant 0 : index
      %c0_8 = arith.constant 0 : index
      %14 = vector.load %arg3[%c0_7, %c0_8] : memref<16x128xf32, #tpu.memory_space<vmem>>, vector<16x128xf32>
      %15 = math.absf %14 : vector<16x128xf32>
      %cst = arith.constant 5.000000e-01 : f32
      %16 = vector.broadcast %cst : f32 to vector<16x128xf32>
      %17 = arith.mulf %16, %13 : vector<16x128xf32>
      %18 = math.tanh %17 : vector<16x128xf32>
      %cst_9 = arith.constant 5.000000e-01 : f32
      %19 = vector.broadcast %cst_9 : f32 to vector<16x128xf32>
      %20 = arith.mulf %19, %18 : vector<16x128xf32>
      %cst_10 = arith.constant 5.000000e-01 : f32
      %21 = vector.broadcast %cst_10 : f32 to vector<16x128xf32>
      %22 = arith.subf %21, %20 : vector<16x128xf32>
      %c0_11 = arith.constant 0 : index
      %c0_12 = arith.constant 0 : index
      %c0_13 = arith.constant 0 : index
      %c0_14 = arith.constant 0 : index
      %23 = vector.load %arg4[%c0_11, %c0_12, %c0_13, %c0_14] : memref<1x4x8x128xf32, #tpu.memory_space<vmem>>, vector<1x1x8x128xf32>
      %24 = vector.shape_cast %23 : vector<1x1x8x128xf32> to vector<8x128xf32>
      %25 = vector.shape_cast %14 : vector<16x128xf32> to vector<2x8x128xf32>
      %cst_15 = arith.constant dense<0.000000e+00> : vector<8x128xf32>
      %26 = vector.multi_reduction <add>, %25, %cst_15 [0] : vector<2x8x128xf32> to vector<8x128xf32>
      %27 = arith.addf %24, %26 : vector<8x128xf32>
      %c0_16 = arith.constant 0 : index
      %c0_17 = arith.constant 0 : index
      %c0_18 = arith.constant 0 : index
      %c0_19 = arith.constant 0 : index
      %28 = vector.load %arg4[%c0_16, %c0_17, %c0_18, %c0_19] : memref<1x4x8x128xf32, #tpu.memory_space<vmem>>, vector<1x1x8x128xf32>
      %29 = vector.shape_cast %28 : vector<1x1x8x128xf32> to vector<8x128xf32>
      %30 = vector.shape_cast %27 : vector<8x128xf32> to vector<1x1x8x128xf32>
      tpu.vector_store %arg4[%c0_16, %c0_17, %c0_18, %c0_19], %30 {strides = array<i32>} : memref<1x4x8x128xf32, #tpu.memory_space<vmem>>, vector<1x1x8x128xf32>,
      %c0_20 = arith.constant 0 : index
      %c1 = arith.constant 1 : index
      %c0_21 = arith.constant 0 : index
      %c0_22 = arith.constant 0 : index
      %31 = vector.load %arg4[%c0_20, %c1, %c0_21, %c0_22] : memref<1x4x8x128xf32, #tpu.memory_space<vmem>>, vector<1x1x8x128xf32>
      %32 = vector.shape_cast %31 : vector<1x1x8x128xf32> to vector<8x128xf32>
      %33 = vector.shape_cast %15 : vector<16x128xf32> to vector<2x8x128xf32>
      %cst_23 = arith.constant dense<0.000000e+00> : vector<8x128xf32>
      %34 = vector.multi_reduction <add>, %33, %cst_23 [0] : vector<2x8x128xf32> to vector<8x128xf32>
      %35 = arith.addf %32, %34 : vector<8x128xf32>
      %c0_24 = arith.constant 0 : index
      %c1_25 = arith.constant 1 : index
      %c0_26 = arith.constant 0 : index
      %c0_27 = arith.constant 0 : index
      %36 = vector.load %arg4[%c0_24, %c1_25, %c0_26, %c0_27] : memref<1x4x8x128xf32, #tpu.memory_space<vmem>>, vector<1x1x8x128xf32>
      %37 = vector.shape_cast %36 : vector<1x1x8x128xf32> to vector<8x128xf32>
      %38 = vector.shape_cast %35 : vector<8x128xf32> to vector<1x1x8x128xf32>
      tpu.vector_store %arg4[%c0_24, %c1_25, %c0_26, %c0_27], %38 {strides = array<i32>} : memref<1x4x8x128xf32, #tpu.memory_space<vmem>>, vector<1x1x8x128xf32>,
      %c0_28 = arith.constant 0 : index
      %c2 = arith.constant 2 : index
      %c0_29 = arith.constant 0 : index
      %c0_30 = arith.constant 0 : index
      %39 = vector.load %arg4[%c0_28, %c2, %c0_29, %c0_30] : memref<1x4x8x128xf32, #tpu.memory_space<vmem>>, vector<1x1x8x128xf32>
      %40 = vector.shape_cast %39 : vector<1x1x8x128xf32> to vector<8x128xf32>
      %41 = arith.mulf %22, %14 : vector<16x128xf32>
      %42 = vector.shape_cast %41 : vector<16x128xf32> to vector<2x8x128xf32>
      %cst_31 = arith.constant dense<0.000000e+00> : vector<8x128xf32>
      %43 = vector.multi_reduction <add>, %42, %cst_31 [0] : vector<2x8x128xf32> to vector<8x128xf32>
      %44 = arith.addf %40, %43 : vector<8x128xf32>
      %c0_32 = arith.constant 0 : index
      %c2_33 = arith.constant 2 : index
      %c0_34 = arith.constant 0 : index
      %c0_35 = arith.constant 0 : index
      %45 = vector.load %arg4[%c0_32, %c2_33, %c0_34, %c0_35] : memref<1x4x8x128xf32, #tpu.memory_space<vmem>>, vector<1x1x8x128xf32>
      %46 = vector.shape_cast %45 : vector<1x1x8x128xf32> to vector<8x128xf32>
      %47 = vector.shape_cast %44 : vector<8x128xf32> to vector<1x1x8x128xf32>
      tpu.vector_store %arg4[%c0_32, %c2_33, %c0_34, %c0_35], %47 {strides = array<i32>} : memref<1x4x8x128xf32, #tpu.memory_space<vmem>>, vector<1x1x8x128xf32>,
      %c0_36 = arith.constant 0 : index
      %c3 = arith.constant 3 : index
      %c0_37 = arith.constant 0 : index
      %c0_38 = arith.constant 0 : index
      %48 = vector.load %arg4[%c0_36, %c3, %c0_37, %c0_38] : memref<1x4x8x128xf32, #tpu.memory_space<vmem>>, vector<1x1x8x128xf32>
      %49 = vector.shape_cast %48 : vector<1x1x8x128xf32> to vector<8x128xf32>
      %50 = arith.mulf %22, %15 : vector<16x128xf32>
      %51 = vector.shape_cast %50 : vector<16x128xf32> to vector<2x8x128xf32>
      %cst_39 = arith.constant dense<0.000000e+00> : vector<8x128xf32>
      %52 = vector.multi_reduction <add>, %51, %cst_39 [0] : vector<2x8x128xf32> to vector<8x128xf32>
      %53 = arith.addf %49, %52 : vector<8x128xf32>
      %c0_40 = arith.constant 0 : index
      %c3_41 = arith.constant 3 : index
      %c0_42 = arith.constant 0 : index
      %c0_43 = arith.constant 0 : index
      %54 = vector.load %arg4[%c0_40, %c3_41, %c0_42, %c0_43] : memref<1x4x8x128xf32, #tpu.memory_space<vmem>>, vector<1x1x8x128xf32>
      %55 = vector.shape_cast %54 : vector<1x1x8x128xf32> to vector<8x128xf32>
      %56 = vector.shape_cast %53 : vector<8x128xf32> to vector<1x1x8x128xf32>
      tpu.vector_store %arg4[%c0_40, %c3_41, %c0_42, %c0_43], %56 {strides = array<i32>} : memref<1x4x8x128xf32, #tpu.memory_space<vmem>>, vector<1x1x8x128xf32>,
    } else {
    }
    %c16_i32_4 = arith.constant 16 : i32
    %10 = arith.cmpi slt, %6, %c16_i32_4 : i32
    %11 = arith.extui %10 : i1 to i32
    %c0_i32_5 = arith.constant 0 : i32
    %12 = arith.cmpi ne, %11, %c0_i32_5 : i32
    scf.if %12 {
      %13 = tpu.iota {dimensions = array<i32: 0>} : vector<16x128xi32>
      %14 = vector.broadcast %6 : i32 to vector<16x128xi32>
      %15 = arith.cmpi slt, %13, %14 : vector<16x128xi32>
      %c0 = arith.constant 0 : index
      %c0_6 = arith.constant 0 : index
      %16 = vector.load %arg2[%c0, %c0_6] : memref<16x128xf32, #tpu.memory_space<vmem>>, vector<16x128xf32>
      %cst = arith.constant 0.000000e+00 : f32
      %17 = vector.broadcast %cst : f32 to vector<16x128xf32>
      %18 = arith.select %15, %16, %17 : vector<16x128xi1>, vector<16x128xf32>
      %c0_7 = arith.constant 0 : index
      %c0_8 = arith.constant 0 : index
      %19 = vector.load %arg3[%c0_7, %c0_8] : memref<16x128xf32, #tpu.memory_space<vmem>>, vector<16x128xf32>
      %cst_9 = arith.constant 0.000000e+00 : f32
      %20 = vector.broadcast %cst_9 : f32 to vector<16x128xf32>
      %21 = arith.select %15, %19, %20 : vector<16x128xi1>, vector<16x128xf32>
      %22 = math.absf %21 : vector<16x128xf32>
      %cst_10 = arith.constant 5.000000e-01 : f32
      %23 = vector.broadcast %cst_10 : f32 to vector<16x128xf32>
      %24 = arith.mulf %23, %18 : vector<16x128xf32>
      %25 = math.tanh %24 : vector<16x128xf32>
      %cst_11 = arith.constant 5.000000e-01 : f32
      %26 = vector.broadcast %cst_11 : f32 to vector<16x128xf32>
      %27 = arith.mulf %26, %25 : vector<16x128xf32>
      %cst_12 = arith.constant 5.000000e-01 : f32
      %28 = vector.broadcast %cst_12 : f32 to vector<16x128xf32>
      %29 = arith.subf %28, %27 : vector<16x128xf32>
      %c0_13 = arith.constant 0 : index
      %c0_14 = arith.constant 0 : index
      %c0_15 = arith.constant 0 : index
      %c0_16 = arith.constant 0 : index
      %30 = vector.load %arg4[%c0_13, %c0_14, %c0_15, %c0_16] : memref<1x4x8x128xf32, #tpu.memory_space<vmem>>, vector<1x1x8x128xf32>
      %31 = vector.shape_cast %30 : vector<1x1x8x128xf32> to vector<8x128xf32>
      %32 = vector.shape_cast %21 : vector<16x128xf32> to vector<2x8x128xf32>
      %cst_17 = arith.constant dense<0.000000e+00> : vector<8x128xf32>
      %33 = vector.multi_reduction <add>, %32, %cst_17 [0] : vector<2x8x128xf32> to vector<8x128xf32>
      %34 = arith.addf %31, %33 : vector<8x128xf32>
      %c0_18 = arith.constant 0 : index
      %c0_19 = arith.constant 0 : index
      %c0_20 = arith.constant 0 : index
      %c0_21 = arith.constant 0 : index
      %35 = vector.load %arg4[%c0_18, %c0_19, %c0_20, %c0_21] : memref<1x4x8x128xf32, #tpu.memory_space<vmem>>, vector<1x1x8x128xf32>
      %36 = vector.shape_cast %35 : vector<1x1x8x128xf32> to vector<8x128xf32>
      %37 = vector.shape_cast %34 : vector<8x128xf32> to vector<1x1x8x128xf32>
      tpu.vector_store %arg4[%c0_18, %c0_19, %c0_20, %c0_21], %37 {strides = array<i32>} : memref<1x4x8x128xf32, #tpu.memory_space<vmem>>, vector<1x1x8x128xf32>,
      %c0_22 = arith.constant 0 : index
      %c1 = arith.constant 1 : index
      %c0_23 = arith.constant 0 : index
      %c0_24 = arith.constant 0 : index
      %38 = vector.load %arg4[%c0_22, %c1, %c0_23, %c0_24] : memref<1x4x8x128xf32, #tpu.memory_space<vmem>>, vector<1x1x8x128xf32>
      %39 = vector.shape_cast %38 : vector<1x1x8x128xf32> to vector<8x128xf32>
      %40 = vector.shape_cast %22 : vector<16x128xf32> to vector<2x8x128xf32>
      %cst_25 = arith.constant dense<0.000000e+00> : vector<8x128xf32>
      %41 = vector.multi_reduction <add>, %40, %cst_25 [0] : vector<2x8x128xf32> to vector<8x128xf32>
      %42 = arith.addf %39, %41 : vector<8x128xf32>
      %c0_26 = arith.constant 0 : index
      %c1_27 = arith.constant 1 : index
      %c0_28 = arith.constant 0 : index
      %c0_29 = arith.constant 0 : index
      %43 = vector.load %arg4[%c0_26, %c1_27, %c0_28, %c0_29] : memref<1x4x8x128xf32, #tpu.memory_space<vmem>>, vector<1x1x8x128xf32>
      %44 = vector.shape_cast %43 : vector<1x1x8x128xf32> to vector<8x128xf32>
      %45 = vector.shape_cast %42 : vector<8x128xf32> to vector<1x1x8x128xf32>
      tpu.vector_store %arg4[%c0_26, %c1_27, %c0_28, %c0_29], %45 {strides = array<i32>} : memref<1x4x8x128xf32, #tpu.memory_space<vmem>>, vector<1x1x8x128xf32>,
      %c0_30 = arith.constant 0 : index
      %c2 = arith.constant 2 : index
      %c0_31 = arith.constant 0 : index
      %c0_32 = arith.constant 0 : index
      %46 = vector.load %arg4[%c0_30, %c2, %c0_31, %c0_32] : memref<1x4x8x128xf32, #tpu.memory_space<vmem>>, vector<1x1x8x128xf32>
      %47 = vector.shape_cast %46 : vector<1x1x8x128xf32> to vector<8x128xf32>
      %48 = arith.mulf %29, %21 : vector<16x128xf32>
      %49 = vector.shape_cast %48 : vector<16x128xf32> to vector<2x8x128xf32>
      %cst_33 = arith.constant dense<0.000000e+00> : vector<8x128xf32>
      %50 = vector.multi_reduction <add>, %49, %cst_33 [0] : vector<2x8x128xf32> to vector<8x128xf32>
      %51 = arith.addf %47, %50 : vector<8x128xf32>
      %c0_34 = arith.constant 0 : index
      %c2_35 = arith.constant 2 : index
      %c0_36 = arith.constant 0 : index
      %c0_37 = arith.constant 0 : index
      %52 = vector.load %arg4[%c0_34, %c2_35, %c0_36, %c0_37] : memref<1x4x8x128xf32, #tpu.memory_space<vmem>>, vector<1x1x8x128xf32>
      %53 = vector.shape_cast %52 : vector<1x1x8x128xf32> to vector<8x128xf32>
      %54 = vector.shape_cast %51 : vector<8x128xf32> to vector<1x1x8x128xf32>
      tpu.vector_store %arg4[%c0_34, %c2_35, %c0_36, %c0_37], %54 {strides = array<i32>} : memref<1x4x8x128xf32, #tpu.memory_space<vmem>>, vector<1x1x8x128xf32>,
      %c0_38 = arith.constant 0 : index
      %c3 = arith.constant 3 : index
      %c0_39 = arith.constant 0 : index
      %c0_40 = arith.constant 0 : index
      %55 = vector.load %arg4[%c0_38, %c3, %c0_39, %c0_40] : memref<1x4x8x128xf32, #tpu.memory_space<vmem>>, vector<1x1x8x128xf32>
      %56 = vector.shape_cast %55 : vector<1x1x8x128xf32> to vector<8x128xf32>
      %57 = arith.mulf %29, %22 : vector<16x128xf32>
      %58 = vector.shape_cast %57 : vector<16x128xf32> to vector<2x8x128xf32>
      %cst_41 = arith.constant dense<0.000000e+00> : vector<8x128xf32>
      %59 = vector.multi_reduction <add>, %58, %cst_41 [0] : vector<2x8x128xf32> to vector<8x128xf32>
      %60 = arith.addf %56, %59 : vector<8x128xf32>
      %c0_42 = arith.constant 0 : index
      %c3_43 = arith.constant 3 : index
      %c0_44 = arith.constant 0 : index
      %c0_45 = arith.constant 0 : index
      %61 = vector.load %arg4[%c0_42, %c3_43, %c0_44, %c0_45] : memref<1x4x8x128xf32, #tpu.memory_space<vmem>>, vector<1x1x8x128xf32>
      %62 = vector.shape_cast %61 : vector<1x1x8x128xf32> to vector<8x128xf32>
      %63 = vector.shape_cast %60 : vector<8x128xf32> to vector<1x1x8x128xf32>
      tpu.vector_store %arg4[%c0_42, %c3_43, %c0_44, %c0_45], %63 {strides = array<i32>} : memref<1x4x8x128xf32, #tpu.memory_space<vmem>>, vector<1x1x8x128xf32>,
    } else {
    }
    return
  }
  func.func @transform_0(%arg0: i32, %arg1: i32) -> (i32, i32) {
    %c1_i32 = arith.constant 1 : i32
    %0 = arith.muli %arg0, %c1_i32 : i32
    %1 = arith.addi %0, %arg1 : i32
    %c0_i32 = arith.constant 0 : i32
    %2 = arith.minsi %1, %c0_i32 : i32
    %c0_i32_0 = arith.constant 0 : i32
    %c0_i32_1 = arith.constant 0 : i32
    return %2, %c0_i32_0 : i32, i32
  }
  func.func @transform_1(%arg0: i32, %arg1: i32) -> (i32, i32) {
    %c1_i32 = arith.constant 1 : i32
    %0 = arith.muli %arg0, %c1_i32 : i32
    %1 = arith.addi %0, %arg1 : i32
    %c0_i32 = arith.constant 0 : i32
    %2 = arith.minsi %1, %c0_i32 : i32
    %c0_i32_0 = arith.constant 0 : i32
    %c0_i32_1 = arith.constant 0 : i32
    return %2, %c0_i32_0 : i32, i32
  }
  func.func @transform_2(%arg0: i32, %arg1: i32) -> (i32, i32, i32, i32) {
    %c0_i32 = arith.constant 0 : i32
    %c0_i32_0 = arith.constant 0 : i32
    %c0_i32_1 = arith.constant 0 : i32
    %c0_i32_2 = arith.constant 0 : i32
    return %arg0, %c0_i32, %c0_i32_0, %c0_i32_1 : i32, i32, i32, i32
  }
}

</mosaic_0001>

<llo_original>
// kernel: pu_loss.1
$region0: #{pu_loss.1}
  #allocation0 [shape = 'u32[]', space=smem, size = 0x4, offset = 0x4, fixed_abs, tag = 'smem constant byte address 0x4 - core index']
  #allocation1 [shape = 'u32[144,128]{1,0:T(1,128)}', space=vmem, size = 0x12000, scoped, tag = 'internal scratch']
  %s0 = inlined_call_operand.vmem [shape: f32[16,128], index: 0, kind: input, shape index: {}]
  %s1 = inlined_call_operand.vmem [shape: f32[16,128], index: 1, kind: input, shape index: {}]
  %s2 = inlined_call_operand.vmem [shape: f32[1,4,8,128], index: 2, kind: output, shape index: {}]
  %s3 = sld [smem:[#allocation0]]
  $region30: #{pu_loss.1} parent=0
    _
  %s5 = ssub.s32 1, %s3
  %s6 = scalar_select 0, %s5, %s3
  // Predicated region
  $region2: #{pu_loss.1} parent=0 // pred_check
    _
  $region3: #{pu_loss.1} parent=0 // pred_check_branch
    %8 = sbr.rel (0) target = $region5
  $region4: #{pu_loss.1} parent=0 // pred_region
    %s9 = sadd.s32 0, 0
    %p10 = scmp.lt.s32.totalorder %s9, 0
    %s11 = scalar_select %p10, %s9, 0
    %s12 = smul.u32 2, %s11
    %p13 = scmp.lt.s32.totalorder %s12, 1
    %s14 = scalar_select %p13, %s12, 1
    %s15 = smul.addr %s14, 8
    %s16 = scalar_lea.vmem %s0, %s15
    %s17 = sadd.s32 0, 0
    %p18 = scmp.lt.s32.totalorder %s17, 0
    %s19 = scalar_select %p18, %s17, 0
    %s20 = smul.u32 2, %s19
  $region5: #{pu_loss.1} parent=0 // pred_fallthru
    _
  // Predicated region
  $region6: #{pu_loss.1} parent=0 // pred_check
    _
  $region7: #{pu_loss.1} parent=0 // pred_check_branch
    %22 = sbr.rel (0) target = $region9
  $region8: #{pu_loss.1} parent=0 // pred_region
    %s23 = sadd.s32 0, 0
    %p24 = scmp.lt.s32.totalorder %s23, 0
    %s25 = scalar_select %p24, %s23, 0
    %s26 = smul.u32 2, %s25
    %p27 = scmp.lt.s32.totalorder %s26, 1
    %s28 = scalar_select %p27, %s26, 1
    %s29 = smul.addr %s28, 8
    %s30 = scalar_lea.vmem %s1, %s29
    %s31 = sadd.s32 0, 0
    %p32 = scmp.lt.s32.totalorder %s31, 0
    %s33 = scalar_select %p32, %s31, 0
    %s34 = smul.u32 2, %s33
  $region9: #{pu_loss.1} parent=0 // pred_fallthru
    _
  %s35 = sadd.s32 0, 0
  %p36 = scmp.lt.s32.totalorder %s35, 0
  %s37 = scalar_select %p36, %s35, 0
  %s38 = smul.u32 2, %s37
  %p39 = scmp.lt.s32.totalorder %s38, 1
  %s40 = scalar_select %p39, %s38, 1
  %s41 = smul.addr %s40, 8
  %s42 = scalar_lea.vmem %s0, %s41
  %s43 = sadd.s32 0, 0
  %p44 = scmp.lt.s32.totalorder %s43, 0
  %s45 = scalar_select %p44, %s43, 0
  %s46 = smul.u32 2, %s45
  %p47 = scmp.lt.s32.totalorder %s46, 1
  %s48 = scalar_select %p47, %s46, 1
  %s49 = smul.addr %s48, 8
  %s50 = scalar_lea.vmem %s1, %s49
  %s51 = sadd.s32 0, 0
  %p52 = scmp.lt.s32.totalorder %s51, 0
  %s53 = scalar_select %p52, %s51, 0
  %s54 = smul.u32 2, %s53
  %p55 = scmp.lt.s32.totalorder %s54, 1
  %s56 = scalar_select %p55, %s54, 1
  %s57 = smul.addr %s56, 8
  %s58 = scalar_lea.vmem %s0, %s57
  %s59 = sadd.s32 0, 0
  %p60 = scmp.lt.s32.totalorder %s59, 0
  %s61 = scalar_select %p60, %s59, 0
  %s62 = smul.u32 2, %s61
  %s63 = sadd.s32 0, 0
  %p64 = scmp.lt.s32.totalorder %s63, 0
  %s65 = scalar_select %p64, %s63, 0
  %s66 = smul.u32 2, %s65
  %p67 = scmp.lt.s32.totalorder %s66, 1
  %s68 = scalar_select %p67, %s66, 1
  %s69 = smul.addr %s68, 8
  %s70 = scalar_lea.vmem %s1, %s69
  %s71 = sadd.s32 0, 0
  %p72 = scmp.lt.s32.totalorder %s71, 0
  %s73 = scalar_select %p72, %s71, 0
  %s74 = smul.u32 2, %s73
  %p75 = scmp.eq.s32.totalorder 0, 0
  // Predicated region
  $region10: #{pu_loss.1} parent=0 // pred_check
    %p76 = pneg %p75
  $region11: #{pu_loss.1} parent=0 // pred_check_branch
    %78 = sbr.rel (%p76) target = $region13
  $region12: #{pu_loss.1} parent=0 // pred_region
    %79 = vst [vmem:[%s2] sm:$0xff] 0.0
    %80 = vst [vmem:[%s2 + $0x8] sm:$0xff] 0.0
    %81 = vst [vmem:[%s2 + $0x10] sm:$0xff] 0.0
    %82 = vst [vmem:[%s2 + $0x18] sm:$0xff] 0.0
  $region13: #{pu_loss.1} parent=0 // pred_fallthru
    _
  %s83 = sadd.s32 0, 0
  %s84 = smul.u32 %s83, 16
  %s85 = ssub.s32 16, %s84
  %p86 = scmp.ge.s32.totalorder %s85, 16
  // Predicated region
  $region14: #{pu_loss.1} parent=0 // pred_check
    %p87 = pneg %p86
  $region15: #{pu_loss.1} parent=0 // pred_check_branch
    %89 = sbr.rel (%p87) target = $region17
  $region16: #{pu_loss.1} parent=0 // pred_region
    %v90 = vld [vmem:[%s58] sm:$0xff]
    %v91 = vld [vmem:[%s58 + $0x8] sm:$0xff]
    %v92 = vld [vmem:[%s70] sm:$0xff]
    %v93 = vld [vmem:[%s70 + $0x8] sm:$0xff]
    %v94 = vand.u32 2147483647, %v92
    %v95 = vand.u32 2147483647, %v93
    %v96 = vmul.f32 %v90, 0.5
    %v97 = vmul.f32 %v91, 0.5
    %v98 = vtanh.pop %v96
    %v99 = vtanh.pop %v97
    %v100 = vmul.f32 %v98, 0.5
    %v101 = vmul.f32 %v99, 0.5
    %v102 = vsub.f32 0.5, %v100
    %v103 = vsub.f32 0.5, %v101
    %v104 = vld [vmem:[%s2] sm:$0xff]
    %v105 = vadd.f32 %v92, %v93
    %v106 = vadd.f32 %v104, %v105
    %107 = vst [vmem:[%s2] sm:$0xff] %v106
    %s108 = scalar_lea.vmem %s2, 8
    %v109 = vld [vmem:[%s108] sm:$0xff]
    %v110 = vadd.f32 %v94, %v95
    %v111 = vadd.f32 %v109, %v110
    %112 = vst [vmem:[%s108] sm:$0xff] %v111
    %s113 = scalar_lea.vmem %s2, 16
    %v114 = vld [vmem:[%s113] sm:$0xff]
    %v115 = vmul.f32 %v102, %v92
    %v116 = vmul.f32 %v103, %v93
    %v117 = vadd.f32 %v115, %v116
    %v118 = vadd.f32 %v114, %v117
    %119 = vst [vmem:[%s113] sm:$0xff] %v118
    %s120 = scalar_lea.vmem %s2, 24
    %v121 = vld [vmem:[%s120] sm:$0xff]
    %v122 = vmul.f32 %v102, %v94
    %v123 = vmul.f32 %v103, %v95
    %v124 = vadd.f32 %v122, %v123
    %v125 = vadd.f32 %v121, %v124
    %126 = vst [vmem:[%s120] sm:$0xff] %v125
  $region17: #{pu_loss.1} parent=0 // pred_fallthru
    _
  %p127 = scmp.lt.s32.totalorder %s85, 16
  // Predicated region
  $region18: #{pu_loss.1} parent=0 // pred_check
    %p128 = pneg %p127
  $region19: #{pu_loss.1} parent=0 // pred_check_branch
    %130 = sbr.rel (%p128) target = $region21
  $region20: #{pu_loss.1} parent=0 // pred_region
    %v131 = vlaneseq
    %v132 = vshrl.u32 %v131, 7
    %v133 = vadd.s32 %v132, 8
    %v134 = vstv %s85
    %vm135 = vcmp.lt.s32.totalorder %v132, %v134
    %vm136 = vcmp.lt.s32.totalorder %v133, %v134
    %v137 = vld [vmem:[%s58] sm:$0xff]
    %v138 = vld [vmem:[%s58 + $0x8] sm:$0xff]
    %v139 = vsel %vm135, %v137, 0.0
    %v140 = vsel %vm136, %v138, 0.0
    %v141 = vld [vmem:[%s70] sm:$0xff]
    %v142 = vld [vmem:[%s70 + $0x8] sm:$0xff]
    %v143 = vsel %vm135, %v141, 0.0
    %v144 = vsel %vm136, %v142, 0.0
    %v145 = vand.u32 2147483647, %v143
    %v146 = vand.u32 2147483647, %v144
    %v147 = vmul.f32 %v139, 0.5
    %v148 = vmul.f32 %v140, 0.5
    %v149 = vtanh.pop %v147
    %v150 = vtanh.pop %v148
    %v151 = vmul.f32 %v149, 0.5
    %v152 = vmul.f32 %v150, 0.5
    %v153 = vsub.f32 0.5, %v151
    %v154 = vsub.f32 0.5, %v152
    %v155 = vld [vmem:[%s2] sm:$0xff]
    %v156 = vadd.f32 %v143, %v144
    %v157 = vadd.f32 %v155, %v156
    %158 = vst [vmem:[%s2] sm:$0xff] %v157
    %s159 = scalar_lea.vmem %s2, 8
    %v160 = vld [vmem:[%s159] sm:$0xff]
    %v161 = vadd.f32 %v145, %v146
    %v162 = vadd.f32 %v160, %v161
    %163 = vst [vmem:[%s159] sm:$0xff] %v162
    %s164 = scalar_lea.vmem %s2, 16
    %v165 = vld [vmem:[%s164] sm:$0xff]
    %v166 = vmul.f32 %v153, %v143
    %v167 = vmul.f32 %v154, %v144
    %v168 = vadd.f32 %v166, %v167
    %v169 = vadd.f32 %v165, %v168
    %170 = vst [vmem:[%s164] sm:$0xff] %v169
    %s171 = scalar_lea.vmem %s2, 24
    %v172 = vld [vmem:[%s171] sm:$0xff]
    %v173 = vmul.f32 %v153, %v145
    %v174 = vmul.f32 %v154, %v146
    %v175 = vadd.f32 %v173, %v174
    %v176 = vadd.f32 %v172, %v175
    %177 = vst [vmem:[%s171] sm:$0xff] %v176
  $region21: #{pu_loss.1} parent=0 // pred_fallthru
    _
  // Predicated region
  $region22: #{pu_loss.1} parent=0 // pred_check
    _
  $region23: #{pu_loss.1} parent=0 // pred_check_branch
    %179 = sbr.rel (0) target = $region25
  $region24: #{pu_loss.1} parent=0 // pred_region
    _
  $region25: #{pu_loss.1} parent=0 // pred_fallthru
    _
  // Predicated region
  $region26: #{pu_loss.1} parent=0 // pred_check
    _
  $region27: #{pu_loss.1} parent=0 // pred_check_branch
    %181 = sbr.rel (0) target = $region29
  $region28: #{pu_loss.1} parent=0 // pred_region
    _
  $region29: #{pu_loss.1} parent=0 // pred_fallthru
    _

</llo_original>
